<compile_context>
chip_gen: v6e
topology: v6e:2x2x1
jax: 0.10.0
libtpu: 0.0.40
codegen_flags: <defaults>
</compile_context>

<pallas_src>
import functools

import jax
import jax.numpy as jnp
from jax import lax
from jax.experimental import pallas as pl
from jax.experimental.pallas import tpu as pltpu


def _round_up(x, m):
    return ((x + m - 1) // m) * m


def _cdiv(a, b):
    return (a + b - 1) // b


def _embedder_kernel(n_cat, n_categories, n_num, dim, cat_pad, num_pad, *refs):
    """Fused embedder over one batch tile.

    Ref layout (presence depends on the static n_cat / n_num):
      if n_cat > 0 : idx_ref    (tb, n_cat)               int32
                     tables_ref (n_cat*V, cat_pad)        f32   (block-diagonal, lane-padded)
      if n_num > 0 : vals_ref   (tb, n_num)               f32
                     w_ref      (1, num_pad)              f32
                     b_ref      (1, num_pad)              f32
      out_ref       (tb, cat_pad + num_pad)               f32   grouped [cat slab | num slab]
    """
    out_ref = refs[-1]
    tb = out_ref.shape[0]
    r = 0

    if n_cat > 0:
        idx_ref, tables_ref = refs[r], refs[r + 1]
        r += 2
        V = n_categories
        # One narrow (tb, V) iota, reused by every column; each column's one-hot is a single
        # V-lane-wide compare (no full-slab accumulate passes, no wide live temporaries).
        iota_v = lax.broadcasted_iota(jnp.int32, (tb, V), 1)
        onehot = jnp.concatenate(
            [(iota_v == idx_ref[:, c:c + 1]).astype(jnp.float32) for c in range(n_cat)],
            axis=-1,
        )  # (tb, n_cat*V); out-of-range / negative ids match nothing -> zero embedding
        # Single block-diagonal contraction on the MXU; N already padded to cat_pad lanes so
        # the result is the lane-dense cat slab and the store below is an unmasked full slice.
        cat_slab = jnp.dot(onehot, tables_ref[...], preferred_element_type=jnp.float32)
        if n_num > 0:
            out_ref[:, 0:cat_pad] = cat_slab
        else:
            out_ref[...] = cat_slab

    if n_num > 0:
        vals_ref, w_ref, b_ref = refs[r], refs[r + 1], refs[r + 2]
        # Per-column dim-wide lane broadcast -> one lane-dense (tb, num_pad) slab, then a
        # single wide exact-f32 FMA on the VPU (never touches the MXU).
        pieces = [jnp.broadcast_to(vals_ref[:, n:n + 1], (tb, dim)) for n in range(n_num)]
        if num_pad > n_num * dim:
            pieces.append(jnp.zeros((tb, num_pad - n_num * dim), jnp.float32))
        vals_exp = pieces[0] if len(pieces) == 1 else jnp.concatenate(pieces, axis=-1)
        num_slab = vals_exp * w_ref[...] + b_ref[...]
        if n_cat > 0:
            out_ref[:, cat_pad:] = num_slab
        else:
            out_ref[...] = num_slab


def _vmem_estimate(tile_b, n_cat, n_categories, n_num, cat_pad, num_pad):
    """Conservative per-step VMEM working-set estimate (bytes)."""
    f32 = 4
    out_w = cat_pad + num_pad
    est = 0
    if n_cat:
        est += 2 * tile_b * _round_up(n_cat, 128) * f32                 # idx tile (double-buffered)
        est += 2 * n_cat * n_categories * cat_pad * f32                 # resident table (worst case x2)
        est += tile_b * _round_up(n_cat * n_categories, 128) * f32      # in-kernel one-hot temp
    if n_num:
        est += 2 * tile_b * _round_up(n_num, 128) * f32                 # vals tile
        est += 2 * 2 * 8 * num_pad * f32                                # w + b (sublane-padded)
        est += tile_b * num_pad * f32                                   # vals_exp temp
    est += 2 * tile_b * out_w * f32                                     # output tile (double-buffered)
    est += tile_b * out_w * f32                                         # slab temps
    return est


def embedder_forward(value, col_kinds, cat_tables, num_w, num_b, dim, *, tile_b=512):
    """JAX wrapper mirroring Embedder.forward(table_name, value).

    value     : (B, n_columns) float32   (categorical entries hold integer-valued floats)
    col_kinds : tuple of "cat" / "num" / "skip" per column (static schema info)
    cat_tables: (n_cat, n_categories, dim) f32   (all cat columns padded to a shared vocab)
    num_w     : (n_num, dim) f32
    num_b     : (n_num, dim) f32
    """
    B = value.shape[0]

    # Static "schema" walk (equivalent of get_embed_cols + per-column dispatch).
    col_plan = []
    ci = ni = 0
    for kind in col_kinds:
        if kind == "cat":
            col_plan.append(("cat", ci)); ci += 1
        elif kind == "num":
            col_plan.append(("num", ni)); ni += 1
        # "skip" columns are not embeddable -> dropped, like in get_embed_cols
    n_cat, n_num = ci, ni
    n_embed = len(col_plan)
    if n_embed == 0:
        # "if not d: return torch.ones((value.shape[0], 1, self.dim))"
        return jnp.ones((B, 1, dim), jnp.float32)

    n_categories = int(cat_tables.shape[1]) if n_cat > 0 else 0
    # Group widths padded to 128-lane multiples so both in-kernel stores are unmasked.
    cat_pad = _round_up(n_cat * dim, 128) if n_cat > 0 else 0
    num_pad = _round_up(n_num * dim, 128) if n_num > 0 else 0
    out_w = cat_pad + num_pad

    # --- batch tiling -------------------------------------------------------
    tile_b = min(tile_b, _round_up(B, 8))
    # v7x has 2 TensorCores: with dimension_semantics=("parallel",) make sure the batch grid
    # has >= 2 tiles whenever there is enough work to split (neutral on v5e/v6e's single TC).
    if B > 8 and _round_up(B, 8) // tile_b < 2:
        tile_b = _round_up(_cdiv(B, 2), 8)
    # Re-derive tile_b against a conservative VMEM budget (fits v7x's 64 MiB with headroom).
    VMEM_BUDGET = 24 * 1024 * 1024
    while tile_b > 8 and _vmem_estimate(tile_b, n_cat, n_categories, n_num, cat_pad, num_pad) > VMEM_BUDGET:
        tile_b = max(8, _round_up(tile_b // 2, 8))
    b_pad = _round_up(B, tile_b)

    inputs, in_specs = [], []

    if n_cat > 0:
        cat_cols = [i for i, k in enumerate(col_kinds) if k == "cat"]
        cat_idx = value[:, cat_cols].astype(jnp.int32)
        cat_idx = jnp.pad(cat_idx, ((0, b_pad - B), (0, 0)))
        # Block-diagonal table (n_cat*V, cat_pad): one contraction yields every cat column's
        # embedding already in lane-dense grouped order; zero-padded to a 128-lane multiple.
        tables_bd = (
            cat_tables[:, :, None, :].astype(jnp.float32)
            * jnp.eye(n_cat, dtype=jnp.float32)[:, None, :, None]
        ).reshape(n_cat * n_categories, n_cat * dim)
        if cat_pad > n_cat * dim:
            tables_bd = jnp.pad(tables_bd, ((0, 0), (0, cat_pad - n_cat * dim)))
        inputs += [cat_idx, tables_bd]
        in_specs += [
            pl.BlockSpec((tile_b, n_cat), lambda i: (i, 0)),
            # Constant index_map -> VMEM-resident across batch tiles (DMA'd once).
            pl.BlockSpec(tables_bd.shape, lambda i: (0, 0)),
        ]

    if n_num > 0:
        num_cols = [i for i, k in enumerate(col_kinds) if k == "num"]
        num_vals = value[:, num_cols].astype(jnp.float32)
        num_vals = jnp.pad(num_vals, ((0, b_pad - B), (0, 0)))
        w_flat = num_w.astype(jnp.float32).reshape(1, n_num * dim)
        b_flat = num_b.astype(jnp.float32).reshape(1, n_num * dim)
        if num_pad > n_num * dim:
            w_flat = jnp.pad(w_flat, ((0, 0), (0, num_pad - n_num * dim)))
            b_flat = jnp.pad(b_flat, ((0, 0), (0, num_pad - n_num * dim)))
        inputs += [num_vals, w_flat, b_flat]
        in_specs += [
            pl.BlockSpec((tile_b, n_num), lambda i: (i, 0)),
            pl.BlockSpec(w_flat.shape, lambda i: (0, 0)),
            pl.BlockSpec(b_flat.shape, lambda i: (0, 0)),
        ]

    kernel = functools.partial(
        _embedder_kernel, n_cat, n_categories, n_num, dim, cat_pad, num_pad)

    # Advisory cost estimate so XLA can schedule the surrounding gather/pad/permute ops
    # against the kernel instead of treating it as opaque.
    flops = 0
    bytes_accessed = b_pad * out_w * 4
    if n_cat > 0:
        flops += 2 * b_pad * (n_cat * n_categories) * cat_pad
        bytes_accessed += b_pad * n_cat * 4 + int(tables_bd.size) * 4
    if n_num > 0:
        flops += 2 * b_pad * num_pad
        bytes_accessed += b_pad * n_num * 4 + 2 * num_pad * 4

    est = _vmem_estimate(tile_b, n_cat, n_categories, n_num, cat_pad, num_pad)
    vmem_limit = int(min(max(2 * est, 32 * 1024 * 1024), 64 * 1024 * 1024))

    out2d = pl.pallas_call(
        kernel,
        out_shape=jax.ShapeDtypeStruct((b_pad, out_w), jnp.float32),
        grid=(b_pad // tile_b,),
        in_specs=in_specs,
        out_specs=pl.BlockSpec((tile_b, out_w), lambda i: (i, 0)),
        compiler_params=pltpu.CompilerParams(
            dimension_semantics=("parallel",),
            vmem_limit_bytes=vmem_limit,
        ),
        cost_estimate=pl.CostEstimate(
            flops=int(flops), transcendentals=0, bytes_accessed=int(bytes_accessed)),
    )(*inputs)

    # Grouped lane layout [cat cols | pad | num cols | pad] -> (B, n_embed, dim) -> schema order.
    parts = []
    if n_cat > 0:
        parts.append(out2d[:B, : n_cat * dim].reshape(B, n_cat, dim))
    if n_num > 0:
        parts.append(out2d[:B, cat_pad: cat_pad + n_num * dim].reshape(B, n_num, dim))
    grouped = parts[0] if len(parts) == 1 else jnp.concatenate(parts, axis=1)
    perm = [j if kind == "cat" else n_cat + j for kind, j in col_plan]
    if perm != list(range(n_embed)):
        grouped = jnp.take(grouped, jnp.asarray(perm, jnp.int32), axis=1)
    return grouped


def _reference_forward(value, col_kinds, cat_tables, num_w, num_b, dim):
    """Pure-JAX reference matching the PyTorch forward, for a correctness check."""
    B = value.shape[0]
    d = []
    ci = ni = 0
    for i, kind in enumerate(col_kinds):
        if kind == "cat":
            idx = value[:, i].astype(jnp.int32)
            d.append(cat_tables[ci][idx])  # (B, dim)
            ci += 1
        elif kind == "num":
            v = value[:, i][:, None]
            d.append(v * num_w[ni][None, :] + num_b[ni][None, :])
            ni += 1
    if not d:
        return jnp.ones((B, 1, dim), jnp.float32)
    return jnp.stack(d, axis=1)


if __name__ == "__main__":
    # Synthetic "schema": 4 columns, alternating categorical / numeric.
    dim = 32
    B = 8
    n_categories = 16
    col_kinds = ("cat", "num", "cat", "num")
    n_cat = sum(k == "cat" for k in col_kinds)
    n_num = sum(k == "num" for k in col_kinds)

    key = jax.random.PRNGKey(0)
    k_tab, k_w, k_b, k_idx, k_val = jax.random.split(key, 5)

    # Deterministic parameter init (Embedding tables + per-column linear maps).
    cat_tables = jax.random.normal(k_tab, (n_cat, n_categories, dim), jnp.float32) * 0.02
    num_w = jax.random.normal(k_w, (n_num, dim), jnp.float32) * 0.02
    num_b = jax.random.normal(k_b, (n_num, dim), jnp.float32) * 0.02

    # Input value tensor: (B, n_columns); categorical columns hold integer-valued floats.
    cat_part = jax.random.randint(k_idx, (B, n_cat), 0, n_categories).astype(jnp.float32)
    num_part = jax.random.normal(k_val, (B, n_num), jnp.float32)
    value = jnp.zeros((B, len(col_kinds)), jnp.float32)
    ci = ni = 0
    for i, kind in enumerate(col_kinds):
        if kind == "cat":
            value = value.at[:, i].set(cat_part[:, ci]); ci += 1
        else:
            value = value.at[:, i].set(num_part[:, ni]); ni += 1

    # Mixed cat/num table.
    out = embedder_forward(value, col_kinds, cat_tables, num_w, num_b, dim)
    out = jax.block_until_ready(out)
    ref = _reference_forward(value, col_kinds, cat_tables, num_w, num_b, dim)
    assert out.shape == (B, len(col_kinds), dim), out.shape
    assert jnp.allclose(out, ref, atol=1e-4, rtol=1e-4), "mixed-table mismatch vs reference"

    # Categorical-only table (exercises the n_num == 0 gating).
    v_c = value[:, [0, 2]]
    out_c = jax.block_until_ready(
        embedder_forward(v_c, ("cat", "cat"), cat_tables, num_w, num_b, dim))
    ref_c = _reference_forward(v_c, ("cat", "cat"), cat_tables, num_w, num_b, dim)
    assert jnp.allclose(out_c, ref_c, atol=1e-4, rtol=1e-4), "cat-only mismatch vs reference"

    # Numeric-only table (exercises the n_cat == 0 gating).
    v_n = value[:, [1, 3]]
    out_n = jax.block_until_ready(
        embedder_forward(v_n, ("num", "num"), cat_tables, num_w, num_b, dim))
    ref_n = _reference_forward(v_n, ("num", "num"), cat_tables, num_w, num_b, dim)
    assert jnp.allclose(out_n, ref_n, atol=1e-4, rtol=1e-4), "num-only mismatch vs reference"

    # Table with no embeddable columns -> ones((B, 1, dim)), no kernel launch.
    out_e = embedder_forward(value, ("skip",) * 4, cat_tables, num_w, num_b, dim)
    assert out_e.shape == (B, 1, dim) and bool(jnp.all(out_e == 1.0)), "empty-table path wrong"

    print("KERNEL_OK")
</pallas_src>

<mosaic_0001>
module attributes {stable_mosaic.version = 11 : i64} {
  func.func @_embedder_kernel(%arg0: i32, %arg1: memref<8x2xi32, #tpu.memory_space<vmem>>, %arg2: memref<32x128xf32, #tpu.memory_space<vmem>>, %arg3: memref<8x2xf32, #tpu.memory_space<vmem>>, %arg4: memref<1x128xf32, #tpu.memory_space<vmem>>, %arg5: memref<1x128xf32, #tpu.memory_space<vmem>>, %arg6: memref<8x256xf32, #tpu.memory_space<vmem>>) attributes {dimension_semantics = [#tpu.dimension_semantics<parallel>], iteration_bounds = array<i64: 1>, scalar_prefetch = 0 : i64, scratch_operands = 0 : i64, tpu.core_type = #tpu.core_type<tc>, window_params = [{transform_indices = @transform_0, window_bounds = array<i64: 8, 2>}, {pipeline_mode = #tpu.pipeline_mode<synchronous>, transform_indices = @transform_1, window_bounds = array<i64: 32, 128>}, {transform_indices = @transform_2, window_bounds = array<i64: 8, 2>}, {pipeline_mode = #tpu.pipeline_mode<synchronous>, transform_indices = @transform_3, window_bounds = array<i64: 1, 128>}, {pipeline_mode = #tpu.pipeline_mode<synchronous>, transform_indices = @transform_4, window_bounds = array<i64: 1, 128>}, {transform_indices = @transform_5, window_bounds = array<i64: 8, 256>}]} {
    %0 = tpu.iota {dimensions = array<i32: 1>} : vector<8x16xi32>
    %c0 = arith.constant 0 : index
    %c0_0 = arith.constant 0 : index
    %1 = vector.load %arg1[%c0, %c0_0] : memref<8x2xi32, #tpu.memory_space<vmem>>, vector<8x1xi32>
    %2 = vector.broadcast %1 : vector<8x1xi32> to vector<8x16xi32>
    %3 = arith.cmpi eq, %0, %2 : vector<8x16xi32>
    %4 = arith.extui %3 : vector<8x16xi1> to vector<8x16xi32>
    %5 = arith.sitofp %4 : vector<8x16xi32> to vector<8x16xf32>
    %c0_1 = arith.constant 0 : index
    %c1 = arith.constant 1 : index
    %6 = vector.load %arg1[%c0_1, %c1] : memref<8x2xi32, #tpu.memory_space<vmem>>, vector<8x1xi32>
    %7 = vector.broadcast %6 : vector<8x1xi32> to vector<8x16xi32>
    %8 = arith.cmpi eq, %0, %7 : vector<8x16xi32>
    %9 = arith.extui %8 : vector<8x16xi1> to vector<8x16xi32>
    %10 = arith.sitofp %9 : vector<8x16xi32> to vector<8x16xf32>
    %11 = tpu.concatenate %5, %10 in 1 : vector<8x16xf32>, vector<8x16xf32> -> vector<8x32xf32>
    %c0_2 = arith.constant 0 : index
    %c0_3 = arith.constant 0 : index
    %12 = vector.load %arg2[%c0_2, %c0_3] : memref<32x128xf32, #tpu.memory_space<vmem>>, vector<32x128xf32>
    %cst = arith.constant dense<0.000000e+00> : vector<8x128xf32>
    %13 = tpu.matmul %11, %12, %cst {dimension_numbers = #tpu.dot_dimension_numbers<[1], [0], [0], [1], [0, 0, 1, 1], [], []>} : vector<8x32xf32>, vector<32x128xf32>, vector<8x128xf32> -> vector<8x128xf32>
    %c0_4 = arith.constant 0 : index
    %c0_5 = arith.constant 0 : index
    %14 = vector.load %arg6[%c0_4, %c0_5] : memref<8x256xf32, #tpu.memory_space<vmem>>, vector<8x128xf32>
    tpu.vector_store %arg6[%c0_4, %c0_5], %13 {strides = array<i32>} : memref<8x256xf32, #tpu.memory_space<vmem>>, vector<8x128xf32>,
    %c0_6 = arith.constant 0 : index
    %c0_7 = arith.constant 0 : index
    %15 = vector.load %arg3[%c0_6, %c0_7] : memref<8x2xf32, #tpu.memory_space<vmem>>, vector<8x1xf32>
    %16 = vector.shape_cast %15 : vector<8x1xf32> to vector<8x1xf32>
    %17 = vector.broadcast %16 : vector<8x1xf32> to vector<8x32xf32>
    %c0_8 = arith.constant 0 : index
    %c1_9 = arith.constant 1 : index
    %18 = vector.load %arg3[%c0_8, %c1_9] : memref<8x2xf32, #tpu.memory_space<vmem>>, vector<8x1xf32>
    %19 = vector.shape_cast %18 : vector<8x1xf32> to vector<8x1xf32>
    %20 = vector.broadcast %19 : vector<8x1xf32> to vector<8x32xf32>
    %cst_10 = arith.constant 0.000000e+00 : f32
    %21 = vector.broadcast %cst_10 : f32 to vector<8x64xf32>
    %22 = tpu.concatenate %17, %20, %21 in 1 : vector<8x32xf32>, vector<8x32xf32>, vector<8x64xf32> -> vector<8x128xf32>
    %c0_11 = arith.constant 0 : index
    %c0_12 = arith.constant 0 : index
    %23 = vector.load %arg4[%c0_11, %c0_12] : memref<1x128xf32, #tpu.memory_space<vmem>>, vector<1x128xf32>
    %24 = vector.broadcast %23 : vector<1x128xf32> to vector<8x128xf32>
    %25 = arith.mulf %22, %24 : vector<8x128xf32>
    %c0_13 = arith.constant 0 : index
    %c0_14 = arith.constant 0 : index
    %26 = vector.load %arg5[%c0_13, %c0_14] : memref<1x128xf32, #tpu.memory_space<vmem>>, vector<1x128xf32>
    %27 = vector.broadcast %26 : vector<1x128xf32> to vector<8x128xf32>
    %28 = arith.addf %25, %27 : vector<8x128xf32>
    %c0_15 = arith.constant 0 : index
    %c128 = arith.constant 128 : index
    %29 = vector.load %arg6[%c0_15, %c128] : memref<8x256xf32, #tpu.memory_space<vmem>>, vector<8x128xf32>
    tpu.vector_store %arg6[%c0_15, %c128], %28 {strides = array<i32>} : memref<8x256xf32, #tpu.memory_space<vmem>>, vector<8x128xf32>,
    return
  }
  func.func @transform_0(%arg0: i32) -> (i32, i32) {
    %c0_i32 = arith.constant 0 : i32
    %c0_i32_0 = arith.constant 0 : i32
    return %arg0, %c0_i32 : i32, i32
  }
  func.func @transform_1(%arg0: i32) -> (i32, i32) {
    %c0_i32 = arith.constant 0 : i32
    %c0_i32_0 = arith.constant 0 : i32
    %c0_i32_1 = arith.constant 0 : i32
    return %c0_i32, %c0_i32_0 : i32, i32
  }
  func.func @transform_2(%arg0: i32) -> (i32, i32) {
    %c0_i32 = arith.constant 0 : i32
    %c0_i32_0 = arith.constant 0 : i32
    return %arg0, %c0_i32 : i32, i32
  }
  func.func @transform_3(%arg0: i32) -> (i32, i32) {
    %c0_i32 = arith.constant 0 : i32
    %c0_i32_0 = arith.constant 0 : i32
    %c0_i32_1 = arith.constant 0 : i32
    return %c0_i32, %c0_i32_0 : i32, i32
  }
  func.func @transform_4(%arg0: i32) -> (i32, i32) {
    %c0_i32 = arith.constant 0 : i32
    %c0_i32_0 = arith.constant 0 : i32
    %c0_i32_1 = arith.constant 0 : i32
    return %c0_i32, %c0_i32_0 : i32, i32
  }
  func.func @transform_5(%arg0: i32) -> (i32, i32) {
    %c0_i32 = arith.constant 0 : i32
    %c0_i32_0 = arith.constant 0 : i32
    return %arg0, %c0_i32 : i32, i32
  }
}

</mosaic_0001>

<llo_original>
// kernel: tpu_custom_call.1
$region0: #{tpu_custom_call.1}
  #allocation0 [shape = 'u32[]', space=smem, size = 0x4, offset = 0x4, fixed_abs, tag = 'smem constant byte address 0x4 - core index']
  #allocation1 [shape = 'u32[144,128]{1,0:T(1,128)}', space=vmem, size = 0x12000, scoped, tag = 'internal scratch']
  %s0 = inlined_call_operand.vmem [shape: s32[8,2], index: 0, kind: input, shape index: {}]
  %s1 = inlined_call_operand.hbm [shape: f32[32,128], index: 1, kind: input, shape index: {}]
  %s2 = inlined_call_operand.vmem [shape: f32[8,2], index: 2, kind: input, shape index: {}]
  %s3 = inlined_call_operand.vmem [shape: f32[1,128], index: 3, kind: input, shape index: {}]
  %s4 = inlined_call_operand.vmem [shape: f32[1,128], index: 4, kind: input, shape index: {}]
  %s5 = inlined_call_operand.hbm [shape: f32[8,256], index: 5, kind: output, shape index: {}]
  %s6 = sld [smem:[#allocation0]]
  $region34: #{tpu_custom_call.1} parent=0
    _
  %s8 = ssub.s32 1, %s6
  %s9 = scalar_select 0, %s8, %s6
  $region1: #{tpu_custom_call.1} parent=0
    #allocation2 [shape = 'u8[16384]{0}', space=vmem, size = 0x4000, scoped, tag = 'input window, operand 1, single buffered']
    #allocation3 [shape = 's32[1]{0}', space=sflag, size = 0x4, scoped, tag = 'scoped memory for tpu_custom_call.1']
    #allocation4 [shape = 's32[1]{0}', space=sflag, size = 0x4, scoped, tag = 'scoped memory for tpu_custom_call.1']
    #allocation5 [shape = 'u8[8192]{0}', space=vmem, size = 0x2000, scoped, tag = 'output window, operand 0, single buffered']
    %10 = vsyncpa [#allocation3], 0
    %11 = vsyncpa [#allocation4], 0
    // Predicated region
    $region2: #{tpu_custom_call.1} parent=1 // pred_check
      _
    $region3: #{tpu_custom_call.1} parent=1 // pred_check_branch
      %13 = sbr.rel (0) target = $region5
    $region4: #{tpu_custom_call.1} parent=1 // pred_region
      _
    $region5: #{tpu_custom_call.1} parent=1 // pred_fallthru
      _
    // Predicated region
    $region6: #{tpu_custom_call.1} parent=1 // pred_check
      _
    $region7: #{tpu_custom_call.1} parent=1 // pred_check_branch
      %15 = sbr.rel (0) target = $region9
    $region8: #{tpu_custom_call.1} parent=1 // pred_region
      %s17 = ssub.s32 512, 512
      %18 = vsyncadd [#allocation3], %s17
      %s19 = sshll.u32 [#allocation2], 4
      %s20 = int_to_ptr.vmem [resolvable:$true] %s19
      %25 = dma.hbm_to_vmem [thread:$0]  %s1, 512, %s20, [#allocation3], 128, 128, 8
    $region9: #{tpu_custom_call.1} parent=1 // pred_fallthru
      _
    // Predicated region
    $region10: #{tpu_custom_call.1} parent=1 // pred_check
      _
    $region11: #{tpu_custom_call.1} parent=1 // pred_check_branch
      %27 = sbr.rel (0) target = $region13
    $region12: #{tpu_custom_call.1} parent=1 // pred_region
      _
    $region13: #{tpu_custom_call.1} parent=1 // pred_fallthru
      _
    // Predicated region
    $region14: #{tpu_custom_call.1} parent=1 // pred_check
      _
    $region15: #{tpu_custom_call.1} parent=1 // pred_check_branch
      %29 = sbr.rel (0) target = $region17
    $region16: #{tpu_custom_call.1} parent=1 // pred_region
      _
    $region17: #{tpu_custom_call.1} parent=1 // pred_fallthru
      _
    // Predicated region
    $region18: #{tpu_custom_call.1} parent=1 // pred_check
      _
    $region19: #{tpu_custom_call.1} parent=1 // pred_check_branch
      %31 = sbr.rel (0) target = $region21
    $region20: #{tpu_custom_call.1} parent=1 // pred_region
      _
    $region21: #{tpu_custom_call.1} parent=1 // pred_fallthru
      _
    // Predicated region
    $region22: #{tpu_custom_call.1} parent=1 // pred_check
      _
    $region23: #{tpu_custom_call.1} parent=1 // pred_check_branch
      %33 = sbr.rel (0) target = $region25
    $region24: #{tpu_custom_call.1} parent=1 // pred_region
      %34 = dma.done [#allocation3], 512
    $region25: #{tpu_custom_call.1} parent=1 // pred_fallthru
      _
    %v35 = vlaneseq
    %v36 = vand.u32 %v35, 127
    %v37 = vld [vmem:[%s0] sm:$0xff]
    %38 = vset.pattern.permute.xlu0 0
    %39 = vperm.xlu0 %38, %v37
    %v40 = vpop.permute.xlu0 %39
    %vm41 = vcmp.eq.s32.totalorder %v36, %v40
    %v42 = vsel %vm41, 1, 0
    %v43 = vcvt.s32.f32 %v42
    %44 = vset.pattern.permute.xlu0 1
    %45 = vperm.xlu0 %44, %v37
    %v46 = vpop.permute.xlu0 %45
    %vm47 = vcmp.eq.s32.totalorder %v36, %v46
    %v48 = vsel %vm47, 1, 0
    %v49 = vcvt.s32.f32 %v48
    %51 = vrot.lane.b32.xlu0 %v49, 16
    %v52 = vpop.permute.xlu0 %51
    %vm54 = vcmask 130048
    %v55 = vsel %vm54, %v43, %v52
    %v56 = vld [vmem:[#allocation2] sm:$0xff]
    %v57 = vld [vmem:[#allocation2 + $0x8] sm:$0xff]
    %v58 = vld [vmem:[#allocation2 + $0x10] sm:$0xff]
    %v59 = vld [vmem:[#allocation2 + $0x18] sm:$0xff]
    %vm60 = vcmask 261120
    %v62 = vsel %vm60, %v55, 0
    %64 = vmatprep.subr.mxu0 0.0
    %65 = vmatpush1.msra.mxu0 0.0
    %66 = vmatprep.subr.mxu0 0.0
    %67 = vmatpush1.msra.mxu0 0.0
    %68 = vmatprep.subr.mxu0 0.0
    %69 = vmatpush1.msra.mxu0 0.0
    %70 = vmatprep.subr.mxu0 0.0
    %71 = vmatpush1.msra.mxu0 0.0
    %72 = vmatprep.subr.mxu0 0.0
    %73 = vmatpush1.msra.mxu0 0.0
    %74 = vmatprep.subr.mxu0 0.0
    %75 = vmatpush1.msra.mxu0 0.0
    %76 = vmatprep.subr.mxu0 0.0
    %77 = vmatpush1.msra.mxu0 0.0
    %78 = vmatprep.subr.mxu0 0.0
    %79 = vmatpush1.msra.mxu0 0.0
    %80 = vmatprep.subr.mxu0 0.0
    %81 = vmatpush1.msra.mxu0 0.0
    %82 = vmatprep.subr.mxu0 0.0
    %83 = vmatpush1.msra.mxu0 0.0
    %84 = vmatprep.subr.mxu0 0.0
    %85 = vmatpush1.msra.mxu0 0.0
    %86 = vmatprep.subr.mxu0 0.0
    %87 = vmatpush1.msra.mxu0 0.0
    %88 = vmatprep.subr.mxu0 0.0
    %89 = vmatpush1.msra.mxu0 %v59
    %90 = vmatprep.subr.mxu0 0.0
    %91 = vmatpush1.msra.mxu0 %v58
    %92 = vmatprep.subr.mxu0 0.0
    %93 = vmatpush1.msra.mxu0 %v57
    %94 = vmatprep.subr.mxu0 0.0
    %95 = vmatpush1.msra.mxu0 %v56
    %96 = vmatprep.subr.mxu0 0.0
    %97 = vmatpush2.msra.mxu0 0.0
    %98 = vmatprep.subr.mxu0 0.0
    %99 = vmatpush2.msra.mxu0 0.0
    %100 = vmatprep.subr.mxu0 0.0
    %101 = vmatpush2.msra.mxu0 0.0
    %102 = vmatprep.subr.mxu0 0.0
    %103 = vmatpush2.msra.mxu0 0.0
    %104 = vmatprep.subr.mxu0 0.0
    %105 = vmatpush2.msra.mxu0 0.0
    %106 = vmatprep.subr.mxu0 0.0
    %107 = vmatpush2.msra.mxu0 0.0
    %108 = vmatprep.subr.mxu0 0.0
    %109 = vmatpush2.msra.mxu0 0.0
    %110 = vmatprep.subr.mxu0 0.0
    %111 = vmatpush2.msra.mxu0 0.0
    %112 = vmatprep.subr.mxu0 0.0
    %113 = vmatpush2.msra.mxu0 0.0
    %114 = vmatprep.subr.mxu0 0.0
    %115 = vmatpush2.msra.mxu0 0.0
    %116 = vmatprep.subr.mxu0 0.0
    %117 = vmatpush2.msra.mxu0 0.0
    %118 = vmatprep.subr.mxu0 0.0
    %119 = vmatpush2.msra.mxu0 0.0
    %120 = vmatprep.subr.mxu0 0.0
    %121 = vmatpush2.msra.mxu0 0.0
    %122 = vmatprep.subr.mxu0 0.0
    %123 = vmatpush2.msra.mxu0 0.0
    %124 = vmatprep.subr.mxu0 0.0
    %125 = vmatpush2.msra.mxu0 0.0
    %126 = vmatprep.subr.mxu0 0.0
    %127 = vmatpush2.msra.mxu0 0.0
    %128 = vmatprep.mubr.f32.mxu0 0.0
    %129 = vmatmul.mubr.f32.gmra.mxu0 %v62
    %v130 = vpop.f32.mrf.mxu0
    %v131 = vadd.f32 0.0, %v130
    %v132 = vpop.f32.mrf.mxu0
    %133 = vdwg.mxu0
    %134 = vst [vmem:[#allocation5] sm:$0xff] %v131
    %v135 = vld [vmem:[%s2] sm:$0xff]
    %137 = vset.pattern.permute.xlu0 0
    %138 = vperm.xlu0 %137, %v135
    %v139 = vpop.permute.xlu0 %138
    %141 = vset.pattern.permute.xlu0 1
    %142 = vperm.xlu0 %141, %v135
    %v143 = vpop.permute.xlu0 %142
    %v145 = vsel %vm60, %v139, %v143
    %vm146 = vcmask 523264
    %v147 = vsel %vm146, %v145, 0.0
    %v148 = vld [vmem:[%s3] sm:$0x1]
    %v150 = vlaneseq
    %v151 = vshrl.u32 %v150, 7
    %v152 = vsub.s32 0, %v151
    %v153 = vrot.slane %v148, %v152
    %v155 = vmul.f32 %v147, %v153
    %v156 = vld [vmem:[%s4] sm:$0x1]
    %v158 = vlaneseq
    %v159 = vshrl.u32 %v158, 7
    %v160 = vsub.s32 0, %v159
    %v161 = vrot.slane %v156, %v160
    %v163 = vadd.f32 %v155, %v161
    %164 = vst [vmem:[#allocation5 + $0x8] sm:$0xff] %v163
    // Predicated region
    $region26: #{tpu_custom_call.1} parent=1 // pred_check
      _
    $region27: #{tpu_custom_call.1} parent=1 // pred_check_branch
      %166 = sbr.rel (0) target = $region29
    $region28: #{tpu_custom_call.1} parent=1 // pred_region
      %s168 = ssub.s32 256, 256
      %169 = vsyncadd [#allocation4], %s168
      %s171 = sshll.u32 [#allocation5], 4
      %s172 = int_to_ptr.vmem [resolvable:$true] %s171
      %174 = dma.vmem_to_hbm [thread:$0]  %s172, 256, %s5, [#allocation4]
    $region29: #{tpu_custom_call.1} parent=1 // pred_fallthru
      _
    // Predicated region
    $region30: #{tpu_custom_call.1} parent=1 // pred_check
      _
    $region31: #{tpu_custom_call.1} parent=1 // pred_check_branch
      %176 = sbr.rel (0) target = $region33
    $region32: #{tpu_custom_call.1} parent=1 // pred_region
      %177 = dma.done [#allocation4], 256
    $region33: #{tpu_custom_call.1} parent=1 // pred_fallthru
      _
    %178 = vsyncpa [#allocation3], 1
    %179 = vsyncpa [#allocation4], 1

</llo_original>
